<compile_context>
chip_gen: v5e
topology: v5e:2x2
jax: 0.10.0
libtpu: 0.0.40
codegen_flags: <defaults>
</compile_context>

<pallas_src>
import math
import functools

import jax
import jax.numpy as jnp
from jax.experimental import pallas as pl
from jax.experimental.pallas import tpu as pltpu


def _rmsnorm_kernel(x_ref, g_ref, o_ref, *, d_model, eps):
    """One (tm, dp) row-block of RMSNorm.

    x_ref: (tm, dp)  rows of the flattened input (padded cols, if any, are zero;
                     garbage rows of a partial last block are masked on store)
    g_ref: (1, dp)   gain (zero-padded past d_model only when d_model < 128)
    o_ref: (tm, dp)  output block, same dtype as the input
    """
    x = x_ref[...].astype(jnp.float32)
    g = g_ref[...].astype(jnp.float32)
    # Mean of squares over the *true* d_model; zero-padded columns contribute 0.
    ms = jnp.sum(x * x, axis=-1, keepdims=True) * (1.0 / d_model)
    inv_rms = jax.lax.rsqrt(ms + eps)                    # EUP slot, effectively free
    o_ref[...] = (x * inv_rms * g).astype(o_ref.dtype)


def _round_up(a, b):
    return (a + b - 1) // b * b


def _cdiv(a, b):
    return (a + b - 1) // b


@functools.partial(jax.jit, static_argnames=("eps",))
def rmsnorm_forward(x, gain, *, eps=1e-5):
    """RMSNorm over the last dim of x; gain has shape (d_model,)."""
    d_model = x.shape[-1]
    assert gain.shape == (d_model,)
    batch_dims = x.shape[:-1]
    M = int(math.prod(batch_dims)) if batch_dims else 1

    itemsize = jnp.dtype(x.dtype).itemsize
    row_align = max(8, 32 // itemsize)       # sublane tile: 8 (f32), 16 (bf16), 32 (i8)

    # Feature dim: pad only for tiny d_model (< 128).  Otherwise take the full
    # d_model as the block's last dim (exempt from the 128-divisibility rule) and
    # skip the extra HBM pad/slice passes entirely.
    pad_cols = d_model < 128
    dp = 128 if pad_cols else d_model

    # Row tile from a ~2 MiB input-block byte target (≈85% of HBM roofline),
    # rounded to the sublane tile.
    target_block_bytes = 2 * 1024 * 1024
    tm = max(1, target_block_bytes // (dp * itemsize))
    tm = min(tm, max(M, 1))
    # Guarantee >= 2 grid steps when M permits, so v7x megacore sharding engages.
    if M > row_align and _cdiv(M, _round_up(tm, row_align)) < 2:
        tm = _cdiv(M, 2)
    tm = _round_up(max(tm, 1), row_align)
    # Cap total live VMEM: 2x double-buffered input + output blocks plus the live
    # f32 intermediates (~2 copies of the block) => (4*itemsize + 8) bytes/elem.
    while tm > row_align and (4 * itemsize + 8) * tm * dp > 28 * 1024 * 1024:
        tm = _round_up(tm // 2, row_align)
    # TODO(synk): for absurd d_model where even one row-aligned block overflows VMEM,
    # a K-split reduction grid would be needed; not implemented (never hit in practice).

    x2d = x.reshape(M, d_model)
    g2d = gain.reshape(1, d_model)
    if pad_cols:
        x2d = jnp.pad(x2d, ((0, 0), (0, dp - d_model)))
        g2d = jnp.pad(g2d, ((0, 0), (0, dp - d_model)))

    grid = (_cdiv(M, tm),)

    cost = pl.CostEstimate(
        flops=4 * M * d_model,
        transcendentals=M,
        bytes_accessed=2 * M * d_model * itemsize
        + d_model * jnp.dtype(gain.dtype).itemsize,
    )

    y2d = pl.pallas_call(
        functools.partial(_rmsnorm_kernel, d_model=d_model, eps=eps),
        out_shape=jax.ShapeDtypeStruct((M, dp), x.dtype),
        grid_spec=pltpu.PrefetchScalarGridSpec(
            num_scalar_prefetch=0,
            grid=grid,
            in_specs=[
                pl.BlockSpec((tm, dp), lambda i: (i, 0)),   # x row block
                pl.BlockSpec((1, dp), lambda i: (0, 0)),    # gain (resident)
            ],
            out_specs=pl.BlockSpec((tm, dp), lambda i: (i, 0)),
        ),
        compiler_params=pltpu.CompilerParams(
            dimension_semantics=("parallel",),
            vmem_limit_bytes=32 * 1024 * 1024,
        ),
        cost_estimate=cost,
    )(x2d, g2d)

    if pad_cols:
        y2d = y2d[:, :d_model]
    return y2d.reshape(*batch_dims, d_model)


def _ref_rmsnorm(x, gain, eps=1e-5):
    xf = x.astype(jnp.float32)
    rms = jnp.sqrt(jnp.mean(xf * xf, axis=-1, keepdims=True) + eps)
    return (xf / rms * gain.astype(jnp.float32)).astype(x.dtype)


if __name__ == "__main__":
    key = jax.random.PRNGKey(0)
    kx, kx2, kx3 = jax.random.split(key, 3)

    # Test 1: f32, lane-aligned d_model, default gain = ones (PyTorch init).
    # M=16 rows -> tm is halved so the grid has 2 steps (v7x megacore path).
    batch, seq, d_model = 2, 8, 128
    x = jax.random.normal(kx, (batch, seq, d_model), dtype=jnp.float32)
    gain = jnp.ones((d_model,), dtype=jnp.float32)
    y = rmsnorm_forward(x, gain)
    jax.block_until_ready(y)
    y_ref = _ref_rmsnorm(x, gain)
    assert y.shape == x.shape
    assert jnp.allclose(y, y_ref, atol=1e-4, rtol=1e-4)

    # Test 2: bf16 input, d_model < 128 (pad-to-128 path) and odd row count.
    batch2, seq2, d_model2 = 2, 5, 96
    x2 = jax.random.normal(kx2, (batch2, seq2, d_model2), dtype=jnp.float32).astype(jnp.bfloat16)
    gain2 = 1.0 + 0.1 * jnp.arange(d_model2, dtype=jnp.float32)
    y2 = rmsnorm_forward(x2, gain2)
    jax.block_until_ready(y2)
    y2_ref = _ref_rmsnorm(x2, gain2)
    assert y2.shape == x2.shape and y2.dtype == x2.dtype
    assert jnp.allclose(y2.astype(jnp.float32), y2_ref.astype(jnp.float32), atol=2e-2, rtol=2e-2)

    # Test 3: f32, d_model >= 128 but NOT a multiple of 128 (full-dim block, no pad)
    # and M not a multiple of the row tile (masked partial last block).
    batch3, seq3, d_model3 = 3, 7, 192
    x3 = jax.random.normal(kx3, (batch3, seq3, d_model3), dtype=jnp.float32)
    gain3 = 1.0 - 0.05 * jnp.arange(d_model3, dtype=jnp.float32) / d_model3
    y3 = rmsnorm_forward(x3, gain3)
    jax.block_until_ready(y3)
    y3_ref = _ref_rmsnorm(x3, gain3)
    assert y3.shape == x3.shape
    assert jnp.allclose(y3, y3_ref, atol=1e-4, rtol=1e-4)

    print("KERNEL_OK")
</pallas_src>

<mosaic_0001>
module attributes {stable_mosaic.version = 11 : i64} {
  func.func @_rmsnorm_kernel(%arg0: i32, %arg1: memref<8x128xf32, #tpu.memory_space<vmem>>, %arg2: memref<1x128xf32, #tpu.memory_space<vmem>>, %arg3: memref<8x128xf32, #tpu.memory_space<vmem>>) attributes {dimension_semantics = [#tpu.dimension_semantics<parallel>], iteration_bounds = array<i64: 2>, scalar_prefetch = 0 : i64, scratch_operands = 0 : i64, tpu.core_type = #tpu.core_type<tc>, window_params = [{transform_indices = @transform_0, window_bounds = array<i64: 8, 128>}, {pipeline_mode = #tpu.pipeline_mode<synchronous>, transform_indices = @transform_1, window_bounds = array<i64: 1, 128>}, {transform_indices = @transform_2, window_bounds = array<i64: 8, 128>}]} {
    %c0 = arith.constant 0 : index
    %c0_0 = arith.constant 0 : index
    %0 = vector.load %arg1[%c0, %c0_0] : memref<8x128xf32, #tpu.memory_space<vmem>>, vector<8x128xf32>
    %c0_1 = arith.constant 0 : index
    %c0_2 = arith.constant 0 : index
    %1 = vector.load %arg2[%c0_1, %c0_2] : memref<1x128xf32, #tpu.memory_space<vmem>>, vector<1x128xf32>
    %2 = arith.mulf %0, %0 : vector<8x128xf32>
    %cst = arith.constant dense<0.000000e+00> : vector<8xf32>
    %3 = vector.multi_reduction <add>, %2, %cst [1] : vector<8x128xf32> to vector<8xf32>
    %4 = vector.shape_cast %3 : vector<8xf32> to vector<8x1xf32>
    %cst_3 = arith.constant 7.812500e-03 : f32
    %5 = vector.broadcast %cst_3 : f32 to vector<8x1xf32>
    %6 = arith.mulf %4, %5 : vector<8x1xf32>
    %cst_4 = arith.constant 9.99999974E-6 : f32
    %7 = vector.broadcast %cst_4 : f32 to vector<8x1xf32>
    %8 = arith.addf %6, %7 : vector<8x1xf32>
    %9 = math.rsqrt %8 : vector<8x1xf32>
    %10 = vector.broadcast %9 : vector<8x1xf32> to vector<8x128xf32>
    %11 = arith.mulf %0, %10 : vector<8x128xf32>
    %12 = vector.broadcast %1 : vector<1x128xf32> to vector<8x128xf32>
    %13 = arith.mulf %11, %12 : vector<8x128xf32>
    %c0_5 = arith.constant 0 : index
    %c0_6 = arith.constant 0 : index
    %14 = vector.load %arg3[%c0_5, %c0_6] : memref<8x128xf32, #tpu.memory_space<vmem>>, vector<8x128xf32>
    tpu.vector_store %arg3[%c0_5, %c0_6], %13 {strides = array<i32>} : memref<8x128xf32, #tpu.memory_space<vmem>>, vector<8x128xf32>,
    return
  }
  func.func @transform_0(%arg0: i32) -> (i32, i32) {
    %c0_i32 = arith.constant 0 : i32
    %c0_i32_0 = arith.constant 0 : i32
    return %arg0, %c0_i32 : i32, i32
  }
  func.func @transform_1(%arg0: i32) -> (i32, i32) {
    %c0_i32 = arith.constant 0 : i32
    %c0_i32_0 = arith.constant 0 : i32
    %c0_i32_1 = arith.constant 0 : i32
    return %c0_i32, %c0_i32_0 : i32, i32
  }
  func.func @transform_2(%arg0: i32) -> (i32, i32) {
    %c0_i32 = arith.constant 0 : i32
    %c0_i32_0 = arith.constant 0 : i32
    return %arg0, %c0_i32 : i32, i32
  }
}

</mosaic_0001>

<llo_original>
// kernel: rmsnorm_forward.1
$region0: #{rmsnorm_forward.1}
  #allocation0 [shape = 'u32[]', space=smem, size = 0x4, offset = 0x4, fixed_abs, tag = 'smem constant byte address 0x4 - core index']
  #allocation1 [shape = 'u32[72,128]{1,0:T(1,128)}', space=vmem, size = 0x9000, scoped, tag = 'internal scratch']
  %s0 = inlined_call_operand.hbm [shape: f32[16,128], index: 0, kind: input, shape index: {}]
  %s1 = inlined_call_operand.vmem [shape: f32[1,128], index: 1, kind: input, shape index: {}]
  %s2 = inlined_call_operand.hbm [shape: f32[16,128], index: 2, kind: output, shape index: {}]
  %s3 = sld [smem:[#allocation0]]
  $region45: #{rmsnorm_forward.1} parent=0
    _
  %s5 = ssub.s32 1, %s3
  %s6 = scalar_select 0, %s5, %s3
  $region1: #{rmsnorm_forward.1} parent=0
    #allocation2 [shape = 'u8[8192]{0}', space=vmem, size = 0x2000, scoped, tag = 'input window, operand 0']
    #allocation3 [shape = 's32[2]{0}', space=sflag, size = 0x8, scoped, tag = 'scoped memory for rmsnorm_forward.1']
    #allocation4 [shape = 's32[2]{0}', space=sflag, size = 0x8, scoped, tag = 'scoped memory for rmsnorm_forward.1']
    #allocation5 [shape = 'u8[8192]{0}', space=vmem, size = 0x2000, scoped, tag = 'output window, operand 0']
    %7 = vsyncpa [#allocation3], 0
    %s8 = scalar_lea.sflag [#allocation3], 1
    %9 = vsyncpa %s8, 0
    %10 = vsyncpa [#allocation4], 0
    %s11 = scalar_lea.sflag [#allocation4], 1
    %12 = vsyncpa %s11, 0
    loop: start=0, step=1, limit=4
    $region2: #{rmsnorm_forward.1} parent=1 // loop_pre_header
      _
    $region3: #{rmsnorm_forward.1} parent=1 // loop_header
      %s14 = sphi 0, %s18
      %p15 = scmp.ge.s32.totalorder %s14, 4
      %s24 = sphi 0, %s26
      %s27 = sphi 0, %s24
      %s28 = sphi 0, %s27
      %s44 = sphi 0, %s28
      %s48 = sphi 0, %s48
      %s50 = sphi 0, %s48
      %s51 = sphi 0, %s50
      %s65 = sphi 0, %s51
      %s71 = sphi 0, %s73
      %s74 = sphi 0, %s71
      %s75 = sphi 0, %s74
      %s91 = sphi 0, %s75
    $region4: #{rmsnorm_forward.1} parent=1 // loop_header_branch
      %17 = sbr.rel (%p15) target = $region8
    $region5: #{rmsnorm_forward.1} parent=1 // loop_body
      %s19 = ssub.s32 %s14, 1
      %s20 = ssub.s32 %s14, 2
      %s21 = sadd.s32 %s14, 1
      %s22 = ssub.s32 %s14, %s21
      %p23 = scmp.eq.s32.totalorder %s22, 0
      %s25 = sadd.s32 %s24, 1
      %s26 = scalar_select %p23, %s24, %s25
      %p29 = pneg %p23
      %p30 = scmp.eq.s32.totalorder %s14, 1
      %p31 = por %p29, %p30
      %p32 = scmp.ne.s32.totalorder %s24, %s27
      %p33 = scmp.eq.s32.totalorder %s14, 0
      %p34 = por %p32, %p33
      %p35 = scmp.ne.s32.totalorder %s24, %s27
      %p36 = scmp.eq.s32.totalorder %s19, 1
      %p37 = por %p35, %p36
      %p38 = scmp.ne.s32.totalorder %s27, %s28
      %p39 = scmp.eq.s32.totalorder %s19, 0
      %p40 = por %p38, %p39
      %p41 = scmp.ne.s32.totalorder %s27, %s28
      %p42 = scmp.eq.s32.totalorder %s20, 1
      %p43 = por %p41, %p42
      %p45 = scmp.ne.s32.totalorder %s28, %s44
      %p46 = scmp.eq.s32.totalorder %s20, 0
      %p47 = por %p45, %p46
      %s49 = sadd.s32 %s48, 1
      %p52 = scmp.eq.s32.totalorder %s14, 1
      %p53 = scmp.ne.s32.totalorder %s48, %s50
      %p54 = scmp.eq.s32.totalorder %s14, 0
      %p55 = por %p53, %p54
      %p56 = scmp.ne.s32.totalorder %s48, %s50
      %p57 = scmp.eq.s32.totalorder %s19, 1
      %p58 = por %p56, %p57
      %p59 = scmp.ne.s32.totalorder %s50, %s51
      %p60 = scmp.eq.s32.totalorder %s19, 0
      %p61 = por %p59, %p60
      %p62 = scmp.ne.s32.totalorder %s50, %s51
      %p63 = scmp.eq.s32.totalorder %s20, 1
      %p64 = por %p62, %p63
      %p66 = scmp.ne.s32.totalorder %s51, %s65
      %p67 = scmp.eq.s32.totalorder %s20, 0
      %p68 = por %p66, %p67
      %s69 = ssub.s32 %s14, %s21
      %p70 = scmp.eq.s32.totalorder %s69, 0
      %s72 = sadd.s32 %s71, 1
      %s73 = scalar_select %p70, %s71, %s72
      %p76 = pneg %p70
      %p77 = scmp.eq.s32.totalorder %s14, 1
      %p78 = por %p76, %p77
      %p79 = scmp.ne.s32.totalorder %s71, %s74
      %p80 = scmp.eq.s32.totalorder %s14, 0
      %p81 = por %p79, %p80
      %p82 = scmp.ne.s32.totalorder %s71, %s74
      %p83 = scmp.eq.s32.totalorder %s19, 1
      %p84 = por %p82, %p83
      %p85 = scmp.ne.s32.totalorder %s74, %s75
      %p86 = scmp.eq.s32.totalorder %s19, 0
      %p87 = por %p85, %p86
      %p88 = scmp.ne.s32.totalorder %s74, %s75
      %p89 = scmp.eq.s32.totalorder %s20, 1
      %p90 = por %p88, %p89
      %p92 = scmp.ne.s32.totalorder %s75, %s91
      %p93 = scmp.eq.s32.totalorder %s20, 0
      %p94 = por %p92, %p93
      %p95 = scmp.le.s32.totalorder 1, %s14
      %p96 = scmp.lt.s32.totalorder %s14, 3
      %p97 = pnand %p95, %p96
      %p98 = pneg %p97
      // Predicated region
      $region9: #{rmsnorm_forward.1} parent=5 // pred_check
        _
      $region10: #{rmsnorm_forward.1} parent=5 // pred_check_branch
        %100 = sbr.rel (%p97) target = $region12
      $region11: #{rmsnorm_forward.1} parent=5 // pred_region
        %s101 = ssub.s32 %s14, 1
        // Predicated region
        $region13: #{rmsnorm_forward.1} parent=11 // pred_check
          %p102 = pneg %p61
        $region14: #{rmsnorm_forward.1} parent=11 // pred_check_branch
          %104 = sbr.rel (%p102) target = $region16
        $region15: #{rmsnorm_forward.1} parent=11 // pred_region
          _
        $region16: #{rmsnorm_forward.1} parent=11 // pred_fallthru
          _
      $region12: #{rmsnorm_forward.1} parent=5 // pred_fallthru
        _
      %p105 = scmp.lt.s32.totalorder %s14, 2
      // Predicated region
      $region17: #{rmsnorm_forward.1} parent=5 // pred_check
        %p106 = pneg %p105
      $region18: #{rmsnorm_forward.1} parent=5 // pred_check_branch
        %108 = sbr.rel (%p106) target = $region20
      $region19: #{rmsnorm_forward.1} parent=5 // pred_region
        // Predicated region
        $region21: #{rmsnorm_forward.1} parent=19 // pred_check
          %p109 = pneg %p34
        $region22: #{rmsnorm_forward.1} parent=19 // pred_check_branch
          %111 = sbr.rel (%p109) target = $region24
        $region23: #{rmsnorm_forward.1} parent=19 // pred_region
          %s112 = sand.u32 %s24, 1
          %s113 = scalar_lea.sflag [#allocation3], %s112
          %s114 = sand.u32 %s24, 1
          %s115 = smul.addr %s114, 8
          %s116 = scalar_lea.vmem [#allocation2], %s115
          %118 = vsyncadd %s113, 0
          %s119 = smul.addr %s14, 8
          %s120 = scalar_lea.hbm %s0, %s119
          %s122 = sshll.u32 %s120, 4
          %s123 = int_to_ptr.hbm [resolvable:$true] %s122
          %s124 = sshll.u32 %s116, 4
          %s125 = int_to_ptr.vmem [resolvable:$true] %s124
          %127 = dma.hbm_to_vmem [thread:$0]  %s123, 128, %s125, %s113
        $region24: #{rmsnorm_forward.1} parent=19 // pred_fallthru
          _
      $region20: #{rmsnorm_forward.1} parent=5 // pred_fallthru
        _
      %p128 = scmp.le.s32.totalorder 1, %s14
      %p129 = scmp.lt.s32.totalorder %s14, 3
      %p130 = pnand %p128, %p129
      %p131 = pneg %p130
      // Predicated region
      $region25: #{rmsnorm_forward.1} parent=5 // pred_check
        _
      $region26: #{rmsnorm_forward.1} parent=5 // pred_check_branch
        %133 = sbr.rel (%p130) target = $region28
      $region27: #{rmsnorm_forward.1} parent=5 // pred_region
        %s134 = ssub.s32 %s14, 1
        %s135 = sand.u32 %s27, 1
        %s136 = scalar_lea.sflag [#allocation3], %s135
        %s137 = sand.u32 %s27, 1
        %s138 = smul.addr %s137, 8
        %s139 = scalar_lea.vmem [#allocation2], %s138
        // Predicated region
        $region29: #{rmsnorm_forward.1} parent=27 // pred_check
          %p140 = pneg %p40
        $region30: #{rmsnorm_forward.1} parent=27 // pred_check_branch
          %142 = sbr.rel (%p140) target = $region32
        $region31: #{rmsnorm_forward.1} parent=27 // pred_region
          %144 = dma.done %s136, 128
        $region32: #{rmsnorm_forward.1} parent=27 // pred_fallthru
          _
        %s145 = sand.u32 %s27, 1
        %s146 = scalar_lea.sflag [#allocation3], %s145
        %s147 = sand.u32 %s27, 1
        %s148 = smul.addr %s147, 8
        %s149 = scalar_lea.vmem [#allocation2], %s148
        %p150 = pneg %p40
        %p151 = pneg %p37
        %p152 = pneg %p61
        %p153 = pneg %p58
        %p154 = pneg %p87
        %p155 = pneg %p84
        %s156 = sand.u32 %s74, 1
        %s157 = scalar_lea.sflag [#allocation4], %s156
        %s158 = sand.u32 %s74, 1
        %s159 = smul.addr %s158, 8
        %s160 = scalar_lea.vmem [#allocation5], %s159
        %v161 = vld [vmem:[%s139] sm:$0xff]
        %v162 = vld [vmem:[%s1] sm:$0x1]
        %v163 = vmul.f32 %v161, %v161
        %164 = vadd.xlane.f32.xlu0 %v163
        %v165 = vpop.xlane.xlu0 %164
        %v166 = vmul.f32 %v165, 0.0078125
        %v167 = vadd.f32 %v166, 1e-05
        %v168 = vrsqrt.pop %v167
        %v169 = vmul.f32 %v168, %v167
        %v170 = vmul.f32 %v169, %v168
        %v171 = vmul.f32 0.5, %v170
        %v172 = vsub.f32 1.5, %v171
        %v173 = vmul.f32 %v168, %v172
        %vm174 = vweird.f32 %v167
        %vm175 = vweird.f32 %v168
        %vm176 = vmor %vm174, %vm175
        %v177 = vsel %vm176, %v168, %v173
        %v178 = vmul.f32 %v161, %v177
        %v180 = vperm.slane %v162, 0
        %v182 = vmul.f32 %v178, %v180
        %183 = vst [vmem:[%s160] sm:$0xff] %v182
        %s184 = sand.u32 %s74, 1
        %s185 = scalar_lea.sflag [#allocation4], %s184
        %s186 = sand.u32 %s74, 1
        %s187 = smul.addr %s186, 8
        %s188 = scalar_lea.vmem [#allocation5], %s187
        // Predicated region
        $region33: #{rmsnorm_forward.1} parent=27 // pred_check
          %p189 = pneg %p84
        $region34: #{rmsnorm_forward.1} parent=27 // pred_check_branch
          %191 = sbr.rel (%p189) target = $region36
        $region35: #{rmsnorm_forward.1} parent=27 // pred_region
          %193 = vsyncadd %s185, 0
          %s194 = smul.addr %s19, 8
          %s195 = scalar_lea.hbm %s2, %s194
          %s197 = sshll.u32 %s188, 4
          %s198 = int_to_ptr.vmem [resolvable:$true] %s197
          %s199 = sshll.u32 %s195, 4
          %s200 = int_to_ptr.hbm [resolvable:$true] %s199
          %202 = dma.vmem_to_hbm [thread:$0]  %s198, 128, %s200, %s185
        $region36: #{rmsnorm_forward.1} parent=27 // pred_fallthru
          _
      $region28: #{rmsnorm_forward.1} parent=5 // pred_fallthru
        _
      %p203 = scmp.le.s32.totalorder 2, %s14
      // Predicated region
      $region37: #{rmsnorm_forward.1} parent=5 // pred_check
        %p204 = pneg %p203
      $region38: #{rmsnorm_forward.1} parent=5 // pred_check_branch
        %206 = sbr.rel (%p204) target = $region40
      $region39: #{rmsnorm_forward.1} parent=5 // pred_region
        %s207 = ssub.s32 %s14, 2
        // Predicated region
        $region41: #{rmsnorm_forward.1} parent=39 // pred_check
          %p208 = pneg %p90
        $region42: #{rmsnorm_forward.1} parent=39 // pred_check_branch
          %210 = sbr.rel (%p208) target = $region44
        $region43: #{rmsnorm_forward.1} parent=39 // pred_region
          %s211 = sand.u32 %s75, 1
          %s212 = scalar_lea.sflag [#allocation4], %s211
          %s213 = sand.u32 %s75, 1
          %s214 = smul.addr %s213, 8
          %s215 = scalar_lea.vmem [#allocation5], %s214
          %217 = dma.done %s212, 128
        $region44: #{rmsnorm_forward.1} parent=39 // pred_fallthru
          _
      $region40: #{rmsnorm_forward.1} parent=5 // pred_fallthru
        _
    $region6: #{rmsnorm_forward.1} parent=1 // loop_footer
      %s18 = sadd.s32 1, %s14
    $region7: #{rmsnorm_forward.1} parent=1 // loop_footer_branch
      %13 = sbr.rel target = $region3
    $region8: #{rmsnorm_forward.1} parent=1 // loop_exit
      _
    %218 = vsyncpa [#allocation3], 1
    %s219 = scalar_lea.sflag [#allocation3], 1
    %220 = vsyncpa %s219, 1
    %221 = vsyncpa [#allocation4], 1
    %s222 = scalar_lea.sflag [#allocation4], 1
    %223 = vsyncpa %s222, 1

</llo_original>
